<compile_context>
chip_gen: v7x
topology: tpu7x:2x2x1
jax: 0.10.0
libtpu: 0.0.40
codegen_flags: <defaults>
</compile_context>

<pallas_src>
import functools

import jax
import jax.numpy as jnp
from jax import lax
from jax.experimental import pallas as pl
from jax.experimental.pallas import tpu as pltpu


def _round_up(x, m):
    return ((x + m - 1) // m) * m


def _cdiv(a, b):
    return -(-a // b)


def _choose_tiles(n_rows, n_lanes, sub_mult, target_tile_bytes):
    """Pick (block_rows, sub_rows, num_chunks) for an (n_rows, n_lanes) array."""
    if n_rows <= sub_mult:
        # One tiny block covering the whole array (full-dim block is always legal).
        return n_rows, n_rows, 1
    # Inner sub-chunk: bounds live f32 intermediates to ~0.5 MiB per temp array
    # regardless of DMA tile size (keeps vreg/VMEM pressure low after upcast).
    sub = (512 * 1024) // (n_lanes * 4)
    sub = max(sub_mult, (sub // sub_mult) * sub_mult)
    sub = min(sub, (n_rows // sub_mult) * sub_mult)
    # Outer (DMA) tile: ~target_tile_bytes of f32-equivalent data per input,
    # a multiple of `sub` so the in-kernel loop never slices past the block.
    rows = max(sub, ((target_tile_bytes // (n_lanes * 4)) // sub) * sub)
    # v7x megacore: never let one chunk swallow everything that could be split.
    half = _round_up(_cdiv(n_rows, 2), sub)
    rows = min(rows, max(sub, half))
    num_chunks = _cdiv(n_rows, rows)
    # Prefer an even chunk count so the two TensorCores stay load-balanced.
    if num_chunks > 1 and num_chunks % 2:
        alt_rows = max(sub, _round_up(_cdiv(n_rows, num_chunks + 1), sub))
        alt_chunks = _cdiv(n_rows, alt_rows)
        if alt_chunks % 2 == 0:
            rows, num_chunks = alt_rows, alt_chunks
    return rows, sub, num_chunks


def _cos_sum_kernel(t_ref, s_ref, o_ref, *, n_valid, rows, sub, n_sub, d, k, kp):
    """One (rows, k*d) tile; writes its partial sum of per-row cosine sims at [0, 0]."""
    # Zero the whole (8, 128) output block, then overwrite [0, 0] below.
    o_ref[...] = jnp.zeros_like(o_ref)

    eps2 = jnp.float32(1e-16)          # (1e-8)^2: clamping n^2 == clamping n
    base = pl.program_id(0) * rows

    if k > 1:
        # Block-diagonal ones (k*D, kp): column j sums lane segment [j*D, (j+1)*D).
        # Built once (constant, hoisted); the three segment reductions then run on
        # the otherwise-idle MXU instead of VALU/XLU.  Extra zero columns (kp > k)
        # yield cos == 0 and are harmless.
        lane = lax.broadcasted_iota(jnp.int32, (k * d, kp), 0)
        col = lax.broadcasted_iota(jnp.int32, (k * d, kp), 1)
        seg = (lane // d == col).astype(jnp.float32)

        def _rowsum(x):
            return jnp.dot(x, seg, preferred_element_type=jnp.float32)
    else:
        def _rowsum(x):
            return jnp.sum(x, axis=-1, keepdims=True)

    def body(j, acc):
        start = pl.multiple_of(j * sub, sub)
        t = t_ref[pl.ds(start, sub), :].astype(jnp.float32)  # upcast in VMEM only
        s = s_ref[pl.ds(start, sub), :].astype(jnp.float32)
        dot = _rowsum(t * s)                                  # (sub, kp)
        t2 = _rowsum(t * t)
        s2 = _rowsum(s * s)
        # rsqrt runs on the EUP slot -> essentially free in the HBM-bound regime.
        cos = dot * lax.rsqrt(jnp.maximum(t2, eps2)) * lax.rsqrt(jnp.maximum(s2, eps2))
        # Ragged-tail mask: Pallas gives no zero-fill guarantee for the out-of-range
        # part of a partial block, so rows >= n_valid must be zeroed here.  This
        # replaces the old wrapper-side jnp.pad (a full extra HBM round trip).
        rid = base + start + lax.broadcasted_iota(jnp.int32, cos.shape, 0)
        cos = jnp.where(rid < n_valid, cos, 0.0)
        return acc + jnp.sum(cos)

    total = lax.fori_loop(0, n_sub, body, jnp.zeros((1, 1), jnp.float32),
                          unroll=n_sub <= 8)
    o_ref[0:1, 0:1] = total


def similarity_loss(teacher_em, student_em, *, target_tile_bytes=8 * 1024 * 1024):
    """loss = 1 - mean cosine similarity over all (batch, row) pairs (dim=-1)."""
    assert teacher_em.shape == student_em.shape, "teacher/student shapes must match"
    assert teacher_em.ndim == 3
    B, N, D = teacher_em.shape
    R = B * N

    in_bytes = jnp.dtype(teacher_em.dtype).itemsize
    sub_mult = {4: 8, 2: 16, 1: 32}.get(in_bytes, 8)   # dtype-native sublane multiple

    # Lane packing for small D: fold k = 128 // D consecutive rows into one lane-row
    # (free contiguous reshape) to restore lane / VMEM density.
    k = 128 // D if D < 128 else 1
    if k > 1 and (R % k != 0 or (R // k) < sub_mult):
        k = 1                                           # fall back to (R, D) layout
    dk = k * D
    n_rows = R // k

    t2d = teacher_em.reshape(n_rows, dk)
    s2d = student_em.reshape(n_rows, dk)

    rows, sub, num_chunks = _choose_tiles(n_rows, dk, sub_mult, target_tile_bytes)

    kernel = functools.partial(
        _cos_sum_kernel,
        n_valid=n_rows, rows=rows, sub=sub, n_sub=rows // sub,
        d=D, k=k, kp=_round_up(k, 8) if k > 1 else 1)

    tile_bytes = rows * dk * in_bytes
    # 2 inputs x 2 pipeline buffers + headroom for f32 sub-chunk temporaries.
    vmem_limit = int(min(96 * 1024 * 1024,
                         max(32 * 1024 * 1024, 4 * tile_bytes + 16 * 1024 * 1024)))

    partial = pl.pallas_call(
        kernel,
        grid=(num_chunks,),
        in_specs=[
            pl.BlockSpec((rows, dk), lambda i: (i, 0)),
            pl.BlockSpec((rows, dk), lambda i: (i, 0)),
        ],
        # One independent (8, 128) partial-sum block per chunk: the grid axis stays
        # truly parallel (megacore), the output is natively (8,128)-tileable, and
        # no SMEM is burned on padded scalar outputs.
        out_specs=pl.BlockSpec((8, 128), lambda i: (i, 0)),
        out_shape=jax.ShapeDtypeStruct((8 * num_chunks, 128), jnp.float32),
        compiler_params=pltpu.CompilerParams(
            dimension_semantics=("parallel",),
            vmem_limit_bytes=vmem_limit,
        ),
        cost_estimate=pl.CostEstimate(
            flops=8 * n_rows * dk,
            transcendentals=2 * R,
            bytes_accessed=2 * n_rows * dk * in_bytes + num_chunks * 8 * 128 * 4,
        ),
    )(t2d, s2d)

    # Sum of per-row cosines / (B*N); mean-of-per-batch-means == global mean since
    # every batch contributes exactly N rows.  Final normalize + (1 - x) stays in
    # the wrapper (a single tiny XLA reduction).
    return jnp.float32(1.0) - jnp.sum(partial) / jnp.float32(R)


def _reference_loss(teacher_em, student_em):
    t = teacher_em.astype(jnp.float32)
    s = student_em.astype(jnp.float32)
    eps = 1e-8
    dot = jnp.sum(t * s, axis=-1)
    tn = jnp.maximum(jnp.sqrt(jnp.sum(t * t, axis=-1)), eps)
    sn = jnp.maximum(jnp.sqrt(jnp.sum(s * s, axis=-1)), eps)
    cos = dot / (tn * sn)
    return 1.0 - jnp.mean(jnp.mean(cos, axis=-1))


if __name__ == "__main__":
    key = jax.random.PRNGKey(0)
    ks = jax.random.split(key, 8)

    # 1) Module-sized input (batch=2, seq=8, hidden=32).
    t1 = jax.random.normal(ks[0], (2, 8, 32), dtype=jnp.float32)
    s1 = jax.random.normal(ks[1], (2, 8, 32), dtype=jnp.float32)
    out1 = jax.block_until_ready(similarity_loss(t1, s1))
    ref1 = _reference_loss(t1, s1)
    assert jnp.allclose(out1, ref1, atol=1e-5, rtol=1e-5), (out1, ref1)

    # 2) D=48: lane-packed (2 rows per lane-row) + masked ragged packed-row tail.
    t2 = jax.random.normal(ks[2], (3, 10, 48), dtype=jnp.float32)
    s2 = jax.random.normal(ks[3], (3, 10, 48), dtype=jnp.float32)
    out2 = jax.block_until_ready(similarity_loss(t2, s2))
    ref2 = _reference_loss(t2, s2)
    assert jnp.allclose(out2, ref2, atol=1e-5, rtol=1e-5), (out2, ref2)

    # 3) Larger D (no packing): 2 parallel grid chunks, in-kernel sub-chunk loop,
    #    masked ragged tail.
    t3 = jax.random.normal(ks[4], (8, 250, 256), dtype=jnp.float32)
    s3 = jax.random.normal(ks[5], (8, 250, 256), dtype=jnp.float32)
    out3 = jax.block_until_ready(similarity_loss(t3, s3))
    ref3 = _reference_loss(t3, s3)
    assert jnp.allclose(out3, ref3, atol=1e-5, rtol=1e-5), (out3, ref3)

    # 4) bf16 inputs: 16-sublane tiling, in-kernel f32 upcast, packing + masking.
    t4 = jax.random.normal(ks[6], (2, 33, 64), dtype=jnp.bfloat16)
    s4 = jax.random.normal(ks[7], (2, 33, 64), dtype=jnp.bfloat16)
    out4 = jax.block_until_ready(similarity_loss(t4, s4))
    ref4 = _reference_loss(t4, s4)
    assert jnp.allclose(out4, ref4, atol=1e-4, rtol=1e-4), (out4, ref4)

    print("KERNEL_OK")
</pallas_src>

<mosaic_0001>
module attributes {stable_mosaic.version = 11 : i64} {
  func.func @_cos_sum_kernel(%arg0: i32, %arg1: memref<16x32xf32, #tpu.memory_space<vmem>>, %arg2: memref<16x32xf32, #tpu.memory_space<vmem>>, %arg3: memref<8x128xf32, #tpu.memory_space<vmem>>) attributes {dimension_semantics = [#tpu.dimension_semantics<parallel>], iteration_bounds = array<i64: 1>, scalar_prefetch = 0 : i64, scratch_operands = 0 : i64, tpu.core_type = #tpu.core_type<tc>, window_params = [{transform_indices = @transform_0, window_bounds = array<i64: 16, 32>}, {transform_indices = @transform_1, window_bounds = array<i64: 16, 32>}, {transform_indices = @transform_2, window_bounds = array<i64: 8, 128>}]} {
    %cst = arith.constant 0.000000e+00 : f32
    %0 = vector.broadcast %cst : f32 to vector<8x128xf32>
    %c0 = arith.constant 0 : index
    %c0_0 = arith.constant 0 : index
    %1 = vector.load %arg3[%c0, %c0_0] : memref<8x128xf32, #tpu.memory_space<vmem>>, vector<8x128xf32>
    tpu.vector_store %arg3[%c0, %c0_0], %0 {strides = array<i32>} : memref<8x128xf32, #tpu.memory_space<vmem>>, vector<8x128xf32>,
    %c16_i32 = arith.constant 16 : i32
    %2 = arith.muli %arg0, %c16_i32 : i32
    %cst_1 = arith.constant 0.000000e+00 : f32
    %3 = vector.broadcast %cst_1 : f32 to vector<1x1xf32>
    %cst_2 = arith.constant 1.000000e-16 : f32
    %c0_i32 = arith.constant 0 : i32
    %c16_i32_3 = arith.constant 16 : i32
    %4 = arith.muli %c0_i32, %c16_i32_3 : i32
    %5 = tpu.assume_multiple %4, 16 : i32
    %6 = arith.index_cast %5 : i32 to index
    %c0_4 = arith.constant 0 : index
    %7 = vector.load %arg1[%6, %c0_4] : memref<16x32xf32, #tpu.memory_space<vmem>>, vector<16x32xf32>
    %8 = arith.index_cast %5 : i32 to index
    %c0_5 = arith.constant 0 : index
    %9 = vector.load %arg2[%8, %c0_5] : memref<16x32xf32, #tpu.memory_space<vmem>>, vector<16x32xf32>
    %10 = arith.mulf %7, %9 : vector<16x32xf32>
    %cst_6 = arith.constant dense<0.000000e+00> : vector<16xf32>
    %11 = vector.multi_reduction <add>, %10, %cst_6 [1] : vector<16x32xf32> to vector<16xf32>
    %12 = vector.shape_cast %11 : vector<16xf32> to vector<16x1xf32>
    %13 = arith.mulf %7, %7 : vector<16x32xf32>
    %cst_7 = arith.constant dense<0.000000e+00> : vector<16xf32>
    %14 = vector.multi_reduction <add>, %13, %cst_7 [1] : vector<16x32xf32> to vector<16xf32>
    %15 = vector.shape_cast %14 : vector<16xf32> to vector<16x1xf32>
    %16 = arith.mulf %9, %9 : vector<16x32xf32>
    %cst_8 = arith.constant dense<0.000000e+00> : vector<16xf32>
    %17 = vector.multi_reduction <add>, %16, %cst_8 [1] : vector<16x32xf32> to vector<16xf32>
    %18 = vector.shape_cast %17 : vector<16xf32> to vector<16x1xf32>
    %19 = vector.broadcast %cst_2 : f32 to vector<16x1xf32>
    %20 = arith.maximumf %15, %19 : vector<16x1xf32>
    %21 = math.rsqrt %20 : vector<16x1xf32>
    %22 = arith.mulf %12, %21 : vector<16x1xf32>
    %23 = vector.broadcast %cst_2 : f32 to vector<16x1xf32>
    %24 = arith.maximumf %18, %23 : vector<16x1xf32>
    %25 = math.rsqrt %24 : vector<16x1xf32>
    %26 = arith.mulf %22, %25 : vector<16x1xf32>
    %27 = arith.addi %2, %5 : i32
    %28 = tpu.iota {dimensions = array<i32: 0>} : vector<16x1xi32>
    %29 = vector.broadcast %27 : i32 to vector<16x1xi32>
    %30 = arith.addi %29, %28 : vector<16x1xi32>
    %c16_i32_9 = arith.constant 16 : i32
    %31 = vector.broadcast %c16_i32_9 : i32 to vector<16x1xi32>
    %32 = arith.cmpi slt, %30, %31 : vector<16x1xi32>
    %cst_10 = arith.constant 0.000000e+00 : f32
    %33 = vector.broadcast %cst_10 : f32 to vector<16x1xf32>
    %34 = arith.select %32, %26, %33 : vector<16x1xi1>, vector<16x1xf32>
    %35 = vector.shape_cast %34 : vector<16x1xf32> to vector<1x16x1xf32>
    %cst_11 = arith.constant dense<0.000000e+00> : vector<1xf32>
    %36 = vector.multi_reduction <add>, %35, %cst_11 [1, 2] : vector<1x16x1xf32> to vector<1xf32>
    %37 = vector.shape_cast %36 : vector<1xf32> to vector<1x1x1xf32>
    %38 = vector.extract %37[0, 0, 0] : f32 from vector<1x1x1xf32>
    %39 = vector.broadcast %38 : f32 to vector<1x1xf32>
    %40 = arith.addf %3, %39 : vector<1x1xf32>
    %c1_i32 = arith.constant 1 : i32
    %c0_12 = arith.constant 0 : index
    %c0_13 = arith.constant 0 : index
    %41 = vector.load %arg3[%c0_12, %c0_13] : memref<8x128xf32, #tpu.memory_space<vmem>>, vector<1x1xf32>
    tpu.vector_store %arg3[%c0_12, %c0_13], %40 {strides = array<i32>} : memref<8x128xf32, #tpu.memory_space<vmem>>, vector<1x1xf32>,
    return
  }
  func.func @transform_0(%arg0: i32) -> (i32, i32) {
    %c0_i32 = arith.constant 0 : i32
    %c0_i32_0 = arith.constant 0 : i32
    return %arg0, %c0_i32 : i32, i32
  }
  func.func @transform_1(%arg0: i32) -> (i32, i32) {
    %c0_i32 = arith.constant 0 : i32
    %c0_i32_0 = arith.constant 0 : i32
    return %arg0, %c0_i32 : i32, i32
  }
  func.func @transform_2(%arg0: i32) -> (i32, i32) {
    %c0_i32 = arith.constant 0 : i32
    %c0_i32_0 = arith.constant 0 : i32
    return %arg0, %c0_i32 : i32, i32
  }
}

</mosaic_0001>

<llo_original>
// kernel: tpu_custom_call.1
$region0: #{tpu_custom_call.1}
  #allocation0 [shape = 'u32[]', space=smem, size = 0x4, offset = 0x4, fixed_abs, tag = 'smem constant byte address 0x4 - core index']
  #allocation1 [shape = 'u32[144,128]{1,0:T(1,128)}', space=vmem, size = 0x12000, scoped, tag = 'internal scratch']
  %s0 = inlined_call_operand.hbm [shape: f32[16,32], index: 0, kind: input, shape index: {}]
  %s1 = inlined_call_operand.hbm [shape: f32[16,32], index: 1, kind: input, shape index: {}]
  %s2 = inlined_call_operand.hbm [shape: f32[8,128], index: 2, kind: output, shape index: {}]
  %s3 = sld [smem:[#allocation0]]
  $region26: #{tpu_custom_call.1} parent=0
    _
  %s5 = ssub.s32 1, %s3
  %s6 = scalar_select 0, %s5, %s3
  $region1: #{tpu_custom_call.1} parent=0
    #allocation2 [shape = 'u8[8192]{0}', space=vmem, size = 0x2000, scoped, tag = 'input window, operand 0, single buffered']
    #allocation3 [shape = 's32[1]{0}', space=sflag, size = 0x4, scoped, tag = 'scoped memory for tpu_custom_call.1']
    #allocation4 [shape = 's32[1]{0}', space=sflag, size = 0x4, scoped, tag = 'scoped memory for tpu_custom_call.1']
    #allocation5 [shape = 'u8[8192]{0}', space=vmem, size = 0x2000, scoped, tag = 'input window, operand 1, single buffered']
    #allocation6 [shape = 's32[1]{0}', space=sflag, size = 0x4, scoped, tag = 'scoped memory for tpu_custom_call.1']
    #allocation7 [shape = 'u8[4096]{0}', space=vmem, size = 0x1000, scoped, tag = 'output window, operand 0, single buffered']
    %7 = vsyncpa [#allocation3], 0
    %8 = vsyncpa [#allocation6], 0
    %9 = vsyncpa [#allocation4], 0
    // Predicated region
    $region2: #{tpu_custom_call.1} parent=1 // pred_check
      _
    $region3: #{tpu_custom_call.1} parent=1 // pred_check_branch
      %11 = sbr.rel (0) target = $region5
    $region4: #{tpu_custom_call.1} parent=1 // pred_region
      %s13 = ssub.s32 256, 256
      %14 = vsyncadd [#allocation3], %s13
      %s15 = sshll.u32 [#allocation2], 4
      %s16 = int_to_ptr.vmem [resolvable:$true] %s15
      %21 = dma.hbm_to_vmem [thread:$0]  %s0, 256, %s16, [#allocation3], 128, 128, 8
    $region5: #{tpu_custom_call.1} parent=1 // pred_fallthru
      _
    // Predicated region
    $region6: #{tpu_custom_call.1} parent=1 // pred_check
      _
    $region7: #{tpu_custom_call.1} parent=1 // pred_check_branch
      %23 = sbr.rel (0) target = $region9
    $region8: #{tpu_custom_call.1} parent=1 // pred_region
      %s25 = ssub.s32 256, 256
      %26 = vsyncadd [#allocation6], %s25
      %s27 = sshll.u32 [#allocation5], 4
      %s28 = int_to_ptr.vmem [resolvable:$true] %s27
      %33 = dma.hbm_to_vmem [thread:$0]  %s1, 256, %s28, [#allocation6], 128, 128, 8
    $region9: #{tpu_custom_call.1} parent=1 // pred_fallthru
      _
    // Predicated region
    $region10: #{tpu_custom_call.1} parent=1 // pred_check
      _
    $region11: #{tpu_custom_call.1} parent=1 // pred_check_branch
      %35 = sbr.rel (0) target = $region13
    $region12: #{tpu_custom_call.1} parent=1 // pred_region
      %36 = dma.done [#allocation3], 256
    $region13: #{tpu_custom_call.1} parent=1 // pred_fallthru
      _
    // Predicated region
    $region14: #{tpu_custom_call.1} parent=1 // pred_check
      _
    $region15: #{tpu_custom_call.1} parent=1 // pred_check_branch
      %38 = sbr.rel (0) target = $region17
    $region16: #{tpu_custom_call.1} parent=1 // pred_region
      %39 = dma.done [#allocation6], 256
    $region17: #{tpu_custom_call.1} parent=1 // pred_fallthru
      _
    %40 = vst [vmem:[#allocation7] sm:$0xff] 0.0
    %s41 = smul.u32 0, 16
    %v42 = vld [vmem:[#allocation2] sm:$0xff]
    %v43 = vld [vmem:[#allocation2 + $0x8] sm:$0xff]
    %v44 = vld [vmem:[#allocation5] sm:$0xff]
    %v45 = vld [vmem:[#allocation5 + $0x8] sm:$0xff]
    %v46 = vmul.f32 %v42, %v44
    %v47 = vmul.f32 %v43, %v45
    %vm48 = vcmask 261120
    %v49 = vsel %vm48, %v46, 0.0
    %50 = vadd.xlane.f32.xlu0 %v49
    %v51 = vpop.xlane.xlu0 %50
    %v52 = vsel %vm48, %v47, 0.0
    %53 = vadd.xlane.f32.xlu0 %v52
    %v54 = vpop.xlane.xlu0 %53
    %v55 = vmul.f32 %v42, %v42
    %v56 = vmul.f32 %v43, %v43
    %v57 = vsel %vm48, %v55, 0.0
    %58 = vadd.xlane.f32.xlu0 %v57
    %v59 = vpop.xlane.xlu0 %58
    %v60 = vsel %vm48, %v56, 0.0
    %61 = vadd.xlane.f32.xlu0 %v60
    %v62 = vpop.xlane.xlu0 %61
    %v63 = vmul.f32 %v44, %v44
    %v64 = vmul.f32 %v45, %v45
    %v65 = vsel %vm48, %v63, 0.0
    %66 = vadd.xlane.f32.xlu0 %v65
    %v67 = vpop.xlane.xlu0 %66
    %v68 = vsel %vm48, %v64, 0.0
    %69 = vadd.xlane.f32.xlu0 %v68
    %v70 = vpop.xlane.xlu0 %69
    %v71 = vmax.f32 %v59, 1e-16
    %v72 = vmax.f32 %v62, 1e-16
    %v73 = vrsqrt.pop %v71
    %v74 = vrsqrt.pop %v72
    %v75 = vmul.f32 %v51, %v73
    %v76 = vmul.f32 %v54, %v74
    %v77 = vmax.f32 %v67, 1e-16
    %v78 = vmax.f32 %v70, 1e-16
    %v79 = vrsqrt.pop %v77
    %v80 = vrsqrt.pop %v78
    %v81 = vmul.f32 %v75, %v79
    %v82 = vmul.f32 %v76, %v80
    %s83 = sadd.s32 %s41, 0
    %v84 = vlaneseq
    %v85 = vshrl.u32 %v84, 7
    %v86 = vadd.s32 %v85, 8
    %v87 = vstv %s83
    %v88 = vadd.s32 %v87, %v85
    %v89 = vadd.s32 %v87, %v86
    %vm90 = vcmp.lt.s32.totalorder %v88, 16
    %vm91 = vcmp.lt.s32.totalorder %v89, 16
    %v92 = vsel %vm90, %v81, 0.0
    %v93 = vsel %vm91, %v82, 0.0
    %vm94 = vcmask 7168
    %v95 = vsel %vm94, %v92, 0.0
    %v96 = vsel %vm94, %v93, 0.0
    %v97 = vadd.f32 %v95, %v96
    %98 = vadd.xlane.f32.xlu0 %v97
    %v99 = vpop.xlane.xlu0 %98
    %v100 = vrot.slane %v99, 4
    %v101 = vadd.f32 %v99, %v100
    %v102 = vrot.slane %v101, 2
    %v103 = vadd.f32 %v101, %v102
    %v104 = vrot.slane %v103, 1
    %v105 = vadd.f32 %v103, %v104
    %s106 = vtos %v105
    %v107 = vstv %s106
    %v108 = vadd.f32 %v107, 0.0
    %vm109 = vcmask 0
    %110 = vst.msk [vmem:[#allocation7] sm:$0x1] %vm109, %v108
    // Predicated region
    $region18: #{tpu_custom_call.1} parent=1 // pred_check
      _
    $region19: #{tpu_custom_call.1} parent=1 // pred_check_branch
      %112 = sbr.rel (0) target = $region21
    $region20: #{tpu_custom_call.1} parent=1 // pred_region
      %s114 = ssub.s32 128, 128
      %115 = vsyncadd [#allocation4], %s114
      %s117 = sshll.u32 [#allocation7], 4
      %s118 = int_to_ptr.vmem [resolvable:$true] %s117
      %120 = dma.vmem_to_hbm [thread:$0]  %s118, 128, %s2, [#allocation4]
    $region21: #{tpu_custom_call.1} parent=1 // pred_fallthru
      _
    // Predicated region
    $region22: #{tpu_custom_call.1} parent=1 // pred_check
      _
    $region23: #{tpu_custom_call.1} parent=1 // pred_check_branch
      %122 = sbr.rel (0) target = $region25
    $region24: #{tpu_custom_call.1} parent=1 // pred_region
      %123 = dma.done [#allocation4], 128
    $region25: #{tpu_custom_call.1} parent=1 // pred_fallthru
      _
    %124 = vsyncpa [#allocation3], 1
    %125 = vsyncpa [#allocation6], 1
    %126 = vsyncpa [#allocation4], 1

</llo_original>
